<compile_context>
chip_gen: v6e
topology: v6e:2x2x1
jax: 0.10.0
libtpu: 0.0.40
codegen_flags: <defaults>
</compile_context>

<pallas_src>
import numpy as np
import jax
import jax.numpy as jnp
from jax.experimental import pallas as pl
from jax.experimental.pallas import tpu as pltpu


def _round_up(x, m):
    return ((x + m - 1) // m) * m


# ----------------------------------------------------------------------------
# Host-side glue: faithful port of get_per_positions_index (pure Python loop).
# ----------------------------------------------------------------------------
def get_per_positions_index(batch, conformers_index):
    batch = np.asarray(batch)
    conformers_index = np.asarray(conformers_index)
    per_position_index = [[] for _ in range(int(batch.max()) + 1)]
    per_conformer_index = [[] for _ in range(int(conformers_index.max()) + 1)]
    pos_counter = 0
    last_mol_index = conformers_index[0]
    for atom_idx, conformer_idx in enumerate(batch):
        mol_idx = conformers_index[conformer_idx]
        positions = per_position_index[conformer_idx]
        if mol_idx != last_mol_index:
            last_mol_index = mol_idx
        elif len(positions) == 0 and pos_counter != 0:
            pos_counter -= len(per_position_index[batch[atom_idx - 1]])
            if len(per_conformer_index[mol_idx]) == 0:
                per_conformer_index[mol_idx] = [
                    int(mol_idx)
                    for _ in range(len(per_position_index[batch[atom_idx - 1]]))
                ]
        positions.append(pos_counter)
        per_position_index[conformer_idx] = positions
        pos_counter += 1
    per_position_index = [i for s in per_position_index for i in s]
    per_conformer_index = [i for s in per_conformer_index for i in s]
    return (np.array(per_position_index, dtype=np.int32),
            np.array(per_conformer_index, dtype=np.int32))


# ----------------------------------------------------------------------------
# Pallas kernel.
#   grid = (molecule tiles [parallel], windowed reduction blocks [arbitrary])
#   prefetch: blk_start[i], blk_last[i]  (first / last reduction block of the
#   rows belonging to molecule tile i in the molecule-sorted slab).
# ----------------------------------------------------------------------------
def esan_head_kernel(blk_start_ref, blk_last_ref,           # scalar prefetch (SMEM)
                     mol_idx_ref, slab_ref, wblk_ref,       # inputs
                     counts_ref, bc_ref, bt_ref,
                     out_ref):                               # output (resident acc)
    i = pl.program_id(0)
    k = pl.program_id(1)
    tile_m = out_ref.shape[0]
    m_base = i * tile_m
    nblk = blk_last_ref[i] - blk_start_ref[i] + 1

    @pl.when(k == 0)
    def _init():
        out_ref[...] = jnp.zeros_like(out_ref)

    # Segment-sum of the merged (lane-packed) rows into molecules: tile-local
    # one-hot on the MXU.  Rows outside this tile / padded rows (-1) match
    # nothing and contribute zero, so block-boundary slop is harmless.
    @pl.when(k < nblk)
    def _accumulate():
        tile_r = slab_ref.shape[0]
        rows = jax.lax.broadcasted_iota(jnp.int32, (tile_m, tile_r), 0) + m_base
        onehot = (rows == mol_idx_ref[...]).astype(jnp.bfloat16)
        out_ref[...] += jnp.dot(onehot, slab_ref[...],
                                preferred_element_type=jnp.float32)

    # Finalize (f32 throughout): block weight [[Wl@Wt],[I]] maps the packed
    # accumulator lanes to  seg2d@(Wl@Wt) + seg_shared, then add count-scaled
    # folded bias and bt.
    @pl.when(k == pl.num_programs(1) - 1)
    def _finalize():
        h = jnp.dot(out_ref[...], wblk_ref[...],
                    preferred_element_type=jnp.float32)
        out_ref[...] = h + counts_ref[...] * bc_ref[...] + bt_ref[...]


# ----------------------------------------------------------------------------
# Wrapper: lane-packing, molecule-sorting, window computation, BlockSpecs.
# conformers_index / per_conformer_index must be concrete host arrays (they
# already are in the original module, which builds them with a Python loop).
# ----------------------------------------------------------------------------
def esan_head(h_2d, conformers_index, w_local, b_local, w_trans, b_trans,
              h_shared, per_conformer_index, num_mols):
    C, H = h_2d.shape
    P = h_shared.shape[0]
    M = int(num_mols)
    f32, bf16 = jnp.float32, jnp.bfloat16

    conf_idx = np.asarray(conformers_index, np.int32)
    pci = np.asarray(per_conformer_index, np.int32)
    assert conf_idx.shape[0] == C and pci.shape[0] == P

    # Lane-packed hidden width: h_2d in lanes [0:H), h_shared in lanes [H:2H).
    # For the module (SchNet hidden//2 = 64) 2H == 128, i.e. fully lane-dense.
    # TODO(synk): if 2H > 128 a split-stream variant would halve streamed bytes.
    HP = _round_up(2 * H, 128)
    R = C + P

    # ---- tile sizes ----
    # Keep >= 2 molecule tiles when possible (v7x: 2 TCs shard the parallel
    # axis); cap at 256 (v5e guidance).  TILE_M must stay a multiple of 8.
    TILE_M = 256
    while TILE_M > 8 and _round_up(M, TILE_M) // TILE_M < 2:
        TILE_M //= 2
    M_pad = _round_up(M, TILE_M)
    n_m_tiles = M_pad // TILE_M

    avg_rows = -(-R // n_m_tiles)                  # avg reduction rows per tile
    TILE_R = max(128, min(1024, _round_up(avg_rows, 128)))
    R_pad = _round_up(R, TILE_R)
    num_blocks = R_pad // TILE_R

    # ---- merged, molecule-sorted, lane-packed reduction slab ----
    mol_of_row = np.concatenate([conf_idx, pci])          # (R,) molecule index
    order = np.argsort(mol_of_row, kind="stable").astype(np.int32)
    mol_sorted = mol_of_row[order]

    slab = jnp.concatenate([
        jnp.pad(h_2d.astype(bf16), ((0, 0), (0, HP - H))),           # lanes [0:H)
        jnp.pad(h_shared.astype(bf16), ((0, 0), (H, HP - 2 * H))),   # lanes [H:2H)
    ], axis=0)[jnp.asarray(order)]
    slab = jnp.pad(slab, ((0, R_pad - R), (0, 0)))

    mol_idx_p = np.full((1, R_pad), -1, np.int32)
    mol_idx_p[0, :R] = mol_sorted

    # ---- per-molecule-tile reduction windows (block granularity) ----
    tile_lo = np.arange(n_m_tiles, dtype=np.int64) * TILE_M
    row_lo = np.searchsorted(mol_sorted, tile_lo, side="left")
    row_hi = np.searchsorted(mol_sorted, tile_lo + TILE_M, side="left")
    blk_start = np.minimum(row_lo // TILE_R, num_blocks - 1).astype(np.int32)
    blk_last = np.minimum(np.maximum(row_hi - 1, row_lo) // TILE_R,
                          num_blocks - 1).astype(np.int32)
    blk_last = np.maximum(blk_last, blk_start)
    K = int((blk_last - blk_start + 1).max())      # static reduction extent

    # ---- fold the two Linears; build the packed finalize weight (f32) ----
    wl = w_local.astype(f32)
    wt = w_trans.astype(f32)
    wblk = jnp.zeros((HP, HP), f32)
    wblk = wblk.at[:H, :H].set(wl @ wt)                    # seg2d path
    wblk = wblk.at[H:2 * H, :H].set(jnp.eye(H, dtype=f32))  # seg_shared path
    bc = jnp.zeros((1, HP), f32).at[0, :H].set(b_local.astype(f32) @ wt)
    bt = jnp.zeros((1, HP), f32).at[0, :H].set(b_trans.astype(f32))

    counts = np.zeros((M_pad, 1), np.float32)
    counts[:, 0] = np.bincount(conf_idx, minlength=M_pad)[:M_pad]

    grid_spec = pltpu.PrefetchScalarGridSpec(
        num_scalar_prefetch=2,
        grid=(n_m_tiles, K),
        in_specs=[
            # merged molecule-index vector (windowed; clamp -> no re-DMA past end)
            pl.BlockSpec((1, TILE_R),
                         lambda i, k, s, e: (0, jnp.minimum(s[i] + k, e[i]))),
            # merged lane-packed feature slab (windowed)
            pl.BlockSpec((TILE_R, HP),
                         lambda i, k, s, e: (jnp.minimum(s[i] + k, e[i]), 0)),
            # packed finalize weight [[Wl@Wt],[I]]
            pl.BlockSpec((HP, HP), lambda i, k, s, e: (0, 0)),
            # per-molecule conformer counts
            pl.BlockSpec((TILE_M, 1), lambda i, k, s, e: (i, 0)),
            # folded bias bl@Wt, and bt
            pl.BlockSpec((1, HP), lambda i, k, s, e: (0, 0)),
            pl.BlockSpec((1, HP), lambda i, k, s, e: (0, 0)),
        ],
        out_specs=pl.BlockSpec((TILE_M, HP), lambda i, k, s, e: (i, 0)),
    )

    out = pl.pallas_call(
        esan_head_kernel,
        out_shape=jax.ShapeDtypeStruct((M_pad, HP), f32),
        grid_spec=grid_spec,
        compiler_params=pltpu.CompilerParams(
            dimension_semantics=("parallel", "arbitrary"),
            vmem_limit_bytes=32 * 1024 * 1024),
    )(jnp.asarray(blk_start), jnp.asarray(blk_last),
      jnp.asarray(mol_idx_p), slab, wblk, jnp.asarray(counts), bc, bt)

    return out[:M, :H]


# ----------------------------------------------------------------------------
# Plain-JAX (f32) reference mirroring the PyTorch module's head math.
# ----------------------------------------------------------------------------
def esan_head_ref(h_2d, conformers_index, w_local, b_local, w_trans, b_trans,
                  h_shared, per_conformer_index, num_mols):
    H = h_2d.shape[1]
    x = h_2d @ w_local + b_local
    seg = jnp.zeros((num_mols, H), jnp.float32).at[conformers_index].add(x)
    h = seg @ w_trans + b_trans
    hs = jnp.zeros((num_mols, H), jnp.float32).at[per_conformer_index].add(h_shared)
    return h + hs


if __name__ == "__main__":
    key = jax.random.PRNGKey(0)

    # Synthetic problem: 2 molecules x 2 conformers x 4 atoms each.
    H = 32                                   # hidden_channels = siamese.hidden // 2
    atoms_per_conf, confs_per_mol, num_mols = 4, 2, 2
    C = confs_per_mol * num_mols             # 4 conformers total
    N = C * atoms_per_conf                   # 16 atoms total

    batch = np.repeat(np.arange(C), atoms_per_conf)                   # atom -> conformer
    conformers_index = np.repeat(np.arange(num_mols), confs_per_mol)  # conformer -> mol

    per_position_index, per_conformer_index = get_per_positions_index(
        batch, conformers_index)
    P = int(per_position_index.max()) + 1    # averaged positions (8)

    k = jax.random.split(key, 8)
    # TODO(synk): SchNetWithMultipleReturns / GATBased (h_layer_2d) not available;
    # h_2d stands in for the per-conformer GAT readout embeddings.
    h_2d = jax.random.normal(k[0], (C, H), jnp.float32)
    # TODO(synk): SchNetNoSum info_sharing (and the z/pos MeanAggregation feeding
    # it) not available; h_shared stands in for its per-position output.
    h_shared = jax.random.normal(k[1], (P, H), jnp.float32)

    # Deterministic parameter init (stored [in, out] so y = x @ W + b).
    w_local = jax.random.normal(k[2], (H, H), jnp.float32) / np.sqrt(H)
    b_local = jax.random.normal(k[3], (H,), jnp.float32) * 0.01
    w_trans = jax.random.normal(k[4], (H, H), jnp.float32) / np.sqrt(H)
    b_trans = jax.random.normal(k[5], (H,), jnp.float32) * 0.01

    out = esan_head(h_2d, conformers_index, w_local, b_local, w_trans, b_trans,
                    h_shared, per_conformer_index, num_mols)
    out = jax.block_until_ready(out)

    ref = esan_head_ref(h_2d, jnp.asarray(conformers_index, jnp.int32),
                        w_local, b_local, w_trans, b_trans,
                        h_shared, jnp.asarray(per_conformer_index, jnp.int32),
                        num_mols)
    # bf16 feature scatter-add with f32 accumulate + f32 finalize.
    np.testing.assert_allclose(np.asarray(out), np.asarray(ref),
                               rtol=5e-2, atol=5e-2)
    print("KERNEL_OK")
</pallas_src>

<mosaic_0001>
module attributes {stable_mosaic.version = 11 : i64} {
  func.func @esan_head_kernel(%arg0: i32, %arg1: i32, %arg2: memref<1xi32, #tpu.memory_space<smem>>, %arg3: memref<1xi32, #tpu.memory_space<smem>>, %arg4: memref<1x128xi32, #tpu.memory_space<vmem>>, %arg5: memref<128x128xbf16, #tpu.memory_space<vmem>>, %arg6: memref<128x128xf32, #tpu.memory_space<vmem>>, %arg7: memref<8x1xf32, #tpu.memory_space<vmem>>, %arg8: memref<1x128xf32, #tpu.memory_space<vmem>>, %arg9: memref<1x128xf32, #tpu.memory_space<vmem>>, %arg10: memref<8x128xf32, #tpu.memory_space<vmem>>) attributes {dimension_semantics = [#tpu.dimension_semantics<parallel>, #tpu.dimension_semantics<arbitrary>], iteration_bounds = array<i64: 1, 1>, scalar_prefetch = 2 : i64, scratch_operands = 0 : i64, tpu.core_type = #tpu.core_type<tc>, window_params = [{transform_indices = @transform_0, window_bounds = array<i64: 1, 128>}, {transform_indices = @transform_1, window_bounds = array<i64: 128, 128>}, {pipeline_mode = #tpu.pipeline_mode<synchronous>, transform_indices = @transform_2, window_bounds = array<i64: 128, 128>}, {transform_indices = @transform_3, window_bounds = array<i64: 8, 1>}, {pipeline_mode = #tpu.pipeline_mode<synchronous>, transform_indices = @transform_4, window_bounds = array<i64: 1, 128>}, {pipeline_mode = #tpu.pipeline_mode<synchronous>, transform_indices = @transform_5, window_bounds = array<i64: 1, 128>}, {transform_indices = @transform_6, window_bounds = array<i64: 8, 128>}]} {
    %c8_i32 = arith.constant 8 : i32
    %0 = arith.muli %arg0, %c8_i32 : i32
    %1 = arith.index_cast %arg0 : i32 to index
    %2 = memref.load %arg3[%1] : memref<1xi32, #tpu.memory_space<smem>>
    %3 = arith.index_cast %arg0 : i32 to index
    %4 = memref.load %arg2[%3] : memref<1xi32, #tpu.memory_space<smem>>
    %5 = arith.subi %2, %4 : i32
    %c1_i32 = arith.constant 1 : i32
    %6 = arith.addi %5, %c1_i32 : i32
    %c0_i32 = arith.constant 0 : i32
    %7 = arith.cmpi eq, %arg1, %c0_i32 : i32
    %8 = arith.extui %7 : i1 to i32
    %c0_i32_0 = arith.constant 0 : i32
    %9 = arith.cmpi ne, %8, %c0_i32_0 : i32
    scf.if %9 {
      %cst = arith.constant 0.000000e+00 : f32
      %16 = vector.broadcast %cst : f32 to vector<8x128xf32>
      %c0 = arith.constant 0 : index
      %c0_4 = arith.constant 0 : index
      %17 = vector.load %arg10[%c0, %c0_4] : memref<8x128xf32, #tpu.memory_space<vmem>>, vector<8x128xf32>
      tpu.vector_store %arg10[%c0, %c0_4], %16 {strides = array<i32>} : memref<8x128xf32, #tpu.memory_space<vmem>>, vector<8x128xf32>,
    } else {
    }
    %10 = arith.cmpi slt, %arg1, %6 : i32
    %11 = arith.extui %10 : i1 to i32
    %c0_i32_1 = arith.constant 0 : i32
    %12 = arith.cmpi ne, %11, %c0_i32_1 : i32
    scf.if %12 {
      %16 = tpu.iota {dimensions = array<i32: 0>} : vector<8x128xi32>
      %17 = vector.broadcast %0 : i32 to vector<8x128xi32>
      %18 = arith.addi %16, %17 : vector<8x128xi32>
      %c0 = arith.constant 0 : index
      %c0_4 = arith.constant 0 : index
      %19 = vector.load %arg4[%c0, %c0_4] : memref<1x128xi32, #tpu.memory_space<vmem>>, vector<1x128xi32>
      %20 = vector.broadcast %19 : vector<1x128xi32> to vector<8x128xi32>
      %21 = arith.cmpi eq, %18, %20 : vector<8x128xi32>
      %22 = arith.extui %21 : vector<8x128xi1> to vector<8x128xi32>
      %23 = arith.sitofp %22 : vector<8x128xi32> to vector<8x128xf32>
      %24 = arith.truncf %23 : vector<8x128xf32> to vector<8x128xbf16>
      %c0_5 = arith.constant 0 : index
      %c0_6 = arith.constant 0 : index
      %25 = vector.load %arg10[%c0_5, %c0_6] : memref<8x128xf32, #tpu.memory_space<vmem>>, vector<8x128xf32>
      %c0_7 = arith.constant 0 : index
      %c0_8 = arith.constant 0 : index
      %26 = vector.load %arg5[%c0_7, %c0_8] : memref<128x128xbf16, #tpu.memory_space<vmem>>, vector<128x128xbf16>
      %cst = arith.constant dense<0.000000e+00> : vector<8x128xf32>
      %27 = tpu.matmul %24, %26, %cst {dimension_numbers = #tpu.dot_dimension_numbers<[1], [0], [0], [1], [0, 0, 1, 1], [], []>} : vector<8x128xbf16>, vector<128x128xbf16>, vector<8x128xf32> -> vector<8x128xf32>
      %28 = arith.addf %25, %27 : vector<8x128xf32>
      %c0_9 = arith.constant 0 : index
      %c0_10 = arith.constant 0 : index
      %29 = vector.load %arg10[%c0_9, %c0_10] : memref<8x128xf32, #tpu.memory_space<vmem>>, vector<8x128xf32>
      tpu.vector_store %arg10[%c0_9, %c0_10], %28 {strides = array<i32>} : memref<8x128xf32, #tpu.memory_space<vmem>>, vector<8x128xf32>,
    } else {
    }
    %c0_i32_2 = arith.constant 0 : i32
    %13 = arith.cmpi eq, %arg1, %c0_i32_2 : i32
    %14 = arith.extui %13 : i1 to i32
    %c0_i32_3 = arith.constant 0 : i32
    %15 = arith.cmpi ne, %14, %c0_i32_3 : i32
    scf.if %15 {
      %c0 = arith.constant 0 : index
      %c0_4 = arith.constant 0 : index
      %16 = vector.load %arg10[%c0, %c0_4] : memref<8x128xf32, #tpu.memory_space<vmem>>, vector<8x128xf32>
      %c0_5 = arith.constant 0 : index
      %c0_6 = arith.constant 0 : index
      %17 = vector.load %arg6[%c0_5, %c0_6] : memref<128x128xf32, #tpu.memory_space<vmem>>, vector<128x128xf32>
      %cst = arith.constant dense<0.000000e+00> : vector<8x128xf32>
      %18 = tpu.matmul %16, %17, %cst {dimension_numbers = #tpu.dot_dimension_numbers<[1], [0], [0], [1], [0, 0, 1, 1], [], []>} : vector<8x128xf32>, vector<128x128xf32>, vector<8x128xf32> -> vector<8x128xf32>
      %c0_7 = arith.constant 0 : index
      %c0_8 = arith.constant 0 : index
      %19 = vector.load %arg7[%c0_7, %c0_8] : memref<8x1xf32, #tpu.memory_space<vmem>>, vector<8x1xf32>
      %c0_9 = arith.constant 0 : index
      %c0_10 = arith.constant 0 : index
      %20 = vector.load %arg8[%c0_9, %c0_10] : memref<1x128xf32, #tpu.memory_space<vmem>>, vector<1x128xf32>
      %21 = vector.broadcast %19 : vector<8x1xf32> to vector<8x128xf32>
      %22 = vector.broadcast %20 : vector<1x128xf32> to vector<8x128xf32>
      %23 = arith.mulf %21, %22 : vector<8x128xf32>
      %24 = arith.addf %18, %23 : vector<8x128xf32>
      %c0_11 = arith.constant 0 : index
      %c0_12 = arith.constant 0 : index
      %25 = vector.load %arg9[%c0_11, %c0_12] : memref<1x128xf32, #tpu.memory_space<vmem>>, vector<1x128xf32>
      %26 = vector.broadcast %25 : vector<1x128xf32> to vector<8x128xf32>
      %27 = arith.addf %24, %26 : vector<8x128xf32>
      %c0_13 = arith.constant 0 : index
      %c0_14 = arith.constant 0 : index
      %28 = vector.load %arg10[%c0_13, %c0_14] : memref<8x128xf32, #tpu.memory_space<vmem>>, vector<8x128xf32>
      tpu.vector_store %arg10[%c0_13, %c0_14], %27 {strides = array<i32>} : memref<8x128xf32, #tpu.memory_space<vmem>>, vector<8x128xf32>,
    } else {
    }
    return
  }
  func.func @transform_0(%arg0: i32, %arg1: i32, %arg2: memref<1xi32, #tpu.memory_space<smem>>, %arg3: memref<1xi32, #tpu.memory_space<smem>>) -> (i32, i32) {
    %0 = arith.index_cast %arg0 : i32 to index
    %1 = memref.load %arg2[%0] : memref<1xi32, #tpu.memory_space<smem>>
    %2 = arith.addi %1, %arg1 : i32
    %3 = arith.index_cast %arg0 : i32 to index
    %4 = memref.load %arg3[%3] : memref<1xi32, #tpu.memory_space<smem>>
    %5 = arith.minsi %2, %4 : i32
    %c0_i32 = arith.constant 0 : i32
    %c0_i32_0 = arith.constant 0 : i32
    return %c0_i32, %5 : i32, i32
  }
  func.func @transform_1(%arg0: i32, %arg1: i32, %arg2: memref<1xi32, #tpu.memory_space<smem>>, %arg3: memref<1xi32, #tpu.memory_space<smem>>) -> (i32, i32) {
    %0 = arith.index_cast %arg0 : i32 to index
    %1 = memref.load %arg2[%0] : memref<1xi32, #tpu.memory_space<smem>>
    %2 = arith.addi %1, %arg1 : i32
    %3 = arith.index_cast %arg0 : i32 to index
    %4 = memref.load %arg3[%3] : memref<1xi32, #tpu.memory_space<smem>>
    %5 = arith.minsi %2, %4 : i32
    %c0_i32 = arith.constant 0 : i32
    %c0_i32_0 = arith.constant 0 : i32
    return %5, %c0_i32 : i32, i32
  }
  func.func @transform_2(%arg0: i32, %arg1: i32, %arg2: memref<1xi32, #tpu.memory_space<smem>>, %arg3: memref<1xi32, #tpu.memory_space<smem>>) -> (i32, i32) {
    %c0_i32 = arith.constant 0 : i32
    %c0_i32_0 = arith.constant 0 : i32
    %c0_i32_1 = arith.constant 0 : i32
    return %c0_i32, %c0_i32_0 : i32, i32
  }
  func.func @transform_3(%arg0: i32, %arg1: i32, %arg2: memref<1xi32, #tpu.memory_space<smem>>, %arg3: memref<1xi32, #tpu.memory_space<smem>>) -> (i32, i32) {
    %c0_i32 = arith.constant 0 : i32
    %c0_i32_0 = arith.constant 0 : i32
    return %arg0, %c0_i32 : i32, i32
  }
  func.func @transform_4(%arg0: i32, %arg1: i32, %arg2: memref<1xi32, #tpu.memory_space<smem>>, %arg3: memref<1xi32, #tpu.memory_space<smem>>) -> (i32, i32) {
    %c0_i32 = arith.constant 0 : i32
    %c0_i32_0 = arith.constant 0 : i32
    %c0_i32_1 = arith.constant 0 : i32
    return %c0_i32, %c0_i32_0 : i32, i32
  }
  func.func @transform_5(%arg0: i32, %arg1: i32, %arg2: memref<1xi32, #tpu.memory_space<smem>>, %arg3: memref<1xi32, #tpu.memory_space<smem>>) -> (i32, i32) {
    %c0_i32 = arith.constant 0 : i32
    %c0_i32_0 = arith.constant 0 : i32
    %c0_i32_1 = arith.constant 0 : i32
    return %c0_i32, %c0_i32_0 : i32, i32
  }
  func.func @transform_6(%arg0: i32, %arg1: i32, %arg2: memref<1xi32, #tpu.memory_space<smem>>, %arg3: memref<1xi32, #tpu.memory_space<smem>>) -> (i32, i32) {
    %c0_i32 = arith.constant 0 : i32
    %c0_i32_0 = arith.constant 0 : i32
    return %arg0, %c0_i32 : i32, i32
  }
}

</mosaic_0001>

<llo_original>
// kernel: tpu_custom_call.1
$region0: #{tpu_custom_call.1}
  #allocation0 [shape = 'u32[]', space=smem, size = 0x4, offset = 0x4, fixed_abs, tag = 'smem constant byte address 0x4 - core index']
  #allocation1 [shape = 'u32[144,128]{1,0:T(1,128)}', space=vmem, size = 0x12000, scoped, tag = 'internal scratch']
  #allocation2 [shape = 's32[1]{0}', space=sflag, size = 0x4, scoped, tag = 'scoped memory for tpu_custom_call.1']
  #allocation3 [shape = 's32[1]{0:T(128)S(6)}', space=smem, size = 0x200, scoped, tag = 'prefetched SMEM operand 0']
  #allocation4 [shape = 's32[1]{0:T(128)S(6)}', space=smem, size = 0x200, scoped, tag = 'prefetched SMEM operand 1']
  %s0 = inlined_call_operand.<no memory space> [shape: s32[1], index: 0, kind: input, shape index: {}]
  %s1 = inlined_call_operand.<no memory space> [shape: s32[1], index: 1, kind: input, shape index: {}]
  %s2 = inlined_call_operand.vmem [shape: s32[1,128], index: 2, kind: input, shape index: {}]
  %s3 = inlined_call_operand.hbm [shape: bf16[128,128], index: 3, kind: input, shape index: {}]
  %s4 = inlined_call_operand.hbm [shape: f32[128,128], index: 4, kind: input, shape index: {}]
  %s5 = inlined_call_operand.vmem [shape: f32[8,1], index: 5, kind: input, shape index: {}]
  %s6 = inlined_call_operand.vmem [shape: f32[1,128], index: 6, kind: input, shape index: {}]
  %s7 = inlined_call_operand.vmem [shape: f32[1,128], index: 7, kind: input, shape index: {}]
  %s8 = inlined_call_operand.hbm [shape: f32[8,128], index: 8, kind: output, shape index: {}]
  %s9 = sld [smem:[#allocation0]]
  $region54: #{tpu_custom_call.1} parent=0
    _
  %s11 = ssub.s32 1, %s9
  %s12 = scalar_select 0, %s11, %s9
  %13 = sst [smem:[#allocation3]] %s0
  %14 = sst [smem:[#allocation4]] %s1
  $region1: #{tpu_custom_call.1} parent=0
    #allocation5 [shape = 'u8[32768]{0}', space=vmem, size = 0x8000, scoped, tag = 'input window, operand 3, single buffered']
    #allocation6 [shape = 's32[1]{0}', space=sflag, size = 0x4, scoped, tag = 'scoped memory for tpu_custom_call.1']
    #allocation7 [shape = 's32[1]{0}', space=sflag, size = 0x4, scoped, tag = 'scoped memory for tpu_custom_call.1']
    #allocation8 [shape = 'u8[65536]{0}', space=vmem, size = 0x10000, scoped, tag = 'input window, operand 4, single buffered']
    #allocation9 [shape = 's32[1]{0}', space=sflag, size = 0x4, scoped, tag = 'scoped memory for tpu_custom_call.1']
    #allocation10 [shape = 'u8[4096]{0}', space=vmem, size = 0x1000, scoped, tag = 'output window, operand 0, single buffered']
    %15 = vsyncpa [#allocation6], 0
    %16 = vsyncpa [#allocation9], 0
    %17 = vsyncpa [#allocation7], 0
    // Predicated region
    $region2: #{tpu_custom_call.1} parent=1 // pred_check
      _
    $region3: #{tpu_custom_call.1} parent=1 // pred_check_branch
      %19 = sbr.rel (0) target = $region5
    $region4: #{tpu_custom_call.1} parent=1 // pred_region
      %s20 = sld [smem:[#allocation3]]
      %s21 = sadd.s32 %s20, 0
      %s22 = sld [smem:[#allocation4]]
      %p23 = scmp.lt.s32.totalorder %s21, %s22
      %s24 = scalar_select %p23, %s21, %s22
      %p25 = scmp.lt.s32.totalorder %s24, 0
      %s26 = scalar_select %p25, %s24, 0
      %s27 = scalar_lea.vmem %s2, %s26
      %s28 = sld [smem:[#allocation3]]
      %s29 = sadd.s32 %s28, 0
      %s30 = sld [smem:[#allocation4]]
      %p31 = scmp.lt.s32.totalorder %s29, %s30
      %s32 = scalar_select %p31, %s29, %s30
    $region5: #{tpu_custom_call.1} parent=1 // pred_fallthru
      _
    // Predicated region
    $region6: #{tpu_custom_call.1} parent=1 // pred_check
      _
    $region7: #{tpu_custom_call.1} parent=1 // pred_check_branch
      %34 = sbr.rel (0) target = $region9
    $region8: #{tpu_custom_call.1} parent=1 // pred_region
      %s35 = sld [smem:[#allocation3]]
      %s36 = sadd.s32 %s35, 0
      %s37 = sld [smem:[#allocation4]]
      %p38 = scmp.lt.s32.totalorder %s36, %s37
      %s39 = scalar_select %p38, %s36, %s37
      %s40 = smul.u32 16, %s39
      %s42 = ssub.s32 1024, 1024
      %43 = vsyncadd [#allocation6], %s42
      %s44 = smul.addr %s40, 64
      %s45 = scalar_lea.hbm %s3, %s44
      %s46 = sshll.u32 [#allocation5], 4
      %s47 = int_to_ptr.vmem [resolvable:$true] %s46
      %52 = dma.hbm_to_vmem [thread:$0]  %s45, 1024, %s47, [#allocation6], 64, 64, 4
    $region9: #{tpu_custom_call.1} parent=1 // pred_fallthru
      _
    // Predicated region
    $region10: #{tpu_custom_call.1} parent=1 // pred_check
      _
    $region11: #{tpu_custom_call.1} parent=1 // pred_check_branch
      %54 = sbr.rel (0) target = $region13
    $region12: #{tpu_custom_call.1} parent=1 // pred_region
      %s56 = ssub.s32 2048, 2048
      %57 = vsyncadd [#allocation9], %s56
      %s58 = sshll.u32 [#allocation8], 4
      %s59 = int_to_ptr.vmem [resolvable:$true] %s58
      %64 = dma.hbm_to_vmem [thread:$0]  %s4, 2048, %s59, [#allocation9], 128, 128, 8
    $region13: #{tpu_custom_call.1} parent=1 // pred_fallthru
      _
    // Predicated region
    $region14: #{tpu_custom_call.1} parent=1 // pred_check
      _
    $region15: #{tpu_custom_call.1} parent=1 // pred_check_branch
      %66 = sbr.rel (0) target = $region17
    $region16: #{tpu_custom_call.1} parent=1 // pred_region
      _
    $region17: #{tpu_custom_call.1} parent=1 // pred_fallthru
      _
    // Predicated region
    $region18: #{tpu_custom_call.1} parent=1 // pred_check
      _
    $region19: #{tpu_custom_call.1} parent=1 // pred_check_branch
      %68 = sbr.rel (0) target = $region21
    $region20: #{tpu_custom_call.1} parent=1 // pred_region
      _
    $region21: #{tpu_custom_call.1} parent=1 // pred_fallthru
      _
    // Predicated region
    $region22: #{tpu_custom_call.1} parent=1 // pred_check
      _
    $region23: #{tpu_custom_call.1} parent=1 // pred_check_branch
      %70 = sbr.rel (0) target = $region25
    $region24: #{tpu_custom_call.1} parent=1 // pred_region
      _
    $region25: #{tpu_custom_call.1} parent=1 // pred_fallthru
      _
    // Predicated region
    $region26: #{tpu_custom_call.1} parent=1 // pred_check
      _
    $region27: #{tpu_custom_call.1} parent=1 // pred_check_branch
      %72 = sbr.rel (0) target = $region29
    $region28: #{tpu_custom_call.1} parent=1 // pred_region
      %73 = dma.done [#allocation6], 1024
    $region29: #{tpu_custom_call.1} parent=1 // pred_fallthru
      _
    // Predicated region
    $region30: #{tpu_custom_call.1} parent=1 // pred_check
      _
    $region31: #{tpu_custom_call.1} parent=1 // pred_check_branch
      %75 = sbr.rel (0) target = $region33
    $region32: #{tpu_custom_call.1} parent=1 // pred_region
      %76 = dma.done [#allocation9], 2048
    $region33: #{tpu_custom_call.1} parent=1 // pred_fallthru
      _
    %s77 = sld [smem:[#allocation3]]
    %s78 = sadd.s32 %s77, 0
    %s79 = sld [smem:[#allocation4]]
    %p80 = scmp.lt.s32.totalorder %s78, %s79
    %s81 = scalar_select %p80, %s78, %s79
    %p82 = scmp.lt.s32.totalorder %s81, 0
    %s83 = scalar_select %p82, %s81, 0
    %s84 = scalar_lea.vmem %s2, %s83
    %s85 = sld [smem:[#allocation3]]
    %s86 = sadd.s32 %s85, 0
    %s87 = sld [smem:[#allocation4]]
    %p88 = scmp.lt.s32.totalorder %s86, %s87
    %s89 = scalar_select %p88, %s86, %s87
    %p90 = scmp.lt.s32.totalorder %s89, 0
    %s91 = scalar_select %p90, %s89, 0
    %s92 = scalar_lea.vmem %s2, %s91
    %s93 = sld [smem:[#allocation3]]
    %s94 = sadd.s32 %s93, 0
    %s95 = sld [smem:[#allocation4]]
    %p96 = scmp.lt.s32.totalorder %s94, %s95
    %s97 = scalar_select %p96, %s94, %s95
    %s98 = sld [smem:[#allocation3]]
    %s99 = sadd.s32 %s98, 0
    %s100 = sld [smem:[#allocation4]]
    %p101 = scmp.lt.s32.totalorder %s99, %s100
    %s102 = scalar_select %p101, %s99, %s100
    %s103 = smul.u32 16, %s102
    %s105 = smul.u32 0, 8
    %s106 = sld [smem:[#allocation4]]
    %s107 = sld [smem:[#allocation3]]
    %s108 = ssub.s32 %s106, %s107
    %s109 = sadd.s32 %s108, 1
    %p110 = scmp.eq.s32.totalorder 0, 0
    // Predicated region
    $region34: #{tpu_custom_call.1} parent=1 // pred_check
      %p111 = pneg %p110
    $region35: #{tpu_custom_call.1} parent=1 // pred_check_branch
      %113 = sbr.rel (%p111) target = $region37
    $region36: #{tpu_custom_call.1} parent=1 // pred_region
      %114 = vst [vmem:[#allocation10] sm:$0xff] 0.0
    $region37: #{tpu_custom_call.1} parent=1 // pred_fallthru
      _
    %p115 = scmp.lt.s32.totalorder 0, %s109
    // Predicated region
    $region38: #{tpu_custom_call.1} parent=1 // pred_check
      %p116 = pneg %p115
    $region39: #{tpu_custom_call.1} parent=1 // pred_check_branch
      %118 = sbr.rel (%p116) target = $region41
    $region40: #{tpu_custom_call.1} parent=1 // pred_region
      %v119 = vlaneseq
      %v120 = vshrl.u32 %v119, 7
      %v121 = vstv %s105
      %v122 = vadd.s32 %v120, %v121
      %v123 = vld [vmem:[%s92] sm:$0x1]
      %v124 = vlaneseq
      %v125 = vshrl.u32 %v124, 7
      %v126 = vsub.s32 0, %v125
      %v127 = vrot.slane %v123, %v126
      %vm128 = vcmp.eq.s32.totalorder %v122, %v127
      %v129 = vsel %vm128, 1, 0
      %v130 = vcvt.s32.f32 %v129
      %v131 = vpack.c.bf16 %v130, %v130
      %v132 = vld [vmem:[#allocation10] sm:$0xff]
      %v133 = vld [vmem:[#allocation5] sm:$0xf]
      %v134 = vld [vmem:[#allocation5 + $0x4] sm:$0xf]
      %v135 = vld [vmem:[#allocation5 + $0x8] sm:$0xf]
      %v136 = vld [vmem:[#allocation5 + $0xc] sm:$0xf]
      %v137 = vld [vmem:[#allocation5 + $0x10] sm:$0xf]
      %v138 = vld [vmem:[#allocation5 + $0x14] sm:$0xf]
      %v139 = vld [vmem:[#allocation5 + $0x18] sm:$0xf]
      %v140 = vld [vmem:[#allocation5 + $0x1c] sm:$0xf]
      %v141 = vld [vmem:[#allocation5 + $0x20] sm:$0xf]
      %v142 = vld [vmem:[#allocation5 + $0x24] sm:$0xf]
      %v143 = vld [vmem:[#allocation5 + $0x28] sm:$0xf]
      %v144 = vld [vmem:[#allocation5 + $0x2c] sm:$0xf]
      %v145 = vld [vmem:[#allocation5 + $0x30] sm:$0xf]
      %v146 = vld [vmem:[#allocation5 + $0x34] sm:$0xf]
      %v147 = vld [vmem:[#allocation5 + $0x38] sm:$0xf]
      %v148 = vld [vmem:[#allocation5 + $0x3c] sm:$0xf]
      %v165 = vunpack.c.l.b16 %v133
      %v166 = vunpack.c.l.b16 %v134
      %v167 = vunpack.c.l.b16 %v135
      %v168 = vunpack.c.l.b16 %v136
      %v169 = vunpack.c.l.b16 %v137
      %v170 = vunpack.c.l.b16 %v138
      %v171 = vunpack.c.l.b16 %v139
      %v172 = vunpack.c.l.b16 %v140
      %v173 = vunpack.c.l.b16 %v141
      %v174 = vunpack.c.l.b16 %v142
      %v175 = vunpack.c.l.b16 %v143
      %v176 = vunpack.c.l.b16 %v144
      %v177 = vunpack.c.l.b16 %v145
      %v178 = vunpack.c.l.b16 %v146
      %v179 = vunpack.c.l.b16 %v147
      %v180 = vunpack.c.l.b16 %v148
      %v181 = vpack.c.b16 %v166, %v165
      %v182 = vpack.c.b16 %v168, %v167
      %v183 = vpack.c.b16 %v170, %v169
      %v184 = vpack.c.b16 %v172, %v171
      %v185 = vpack.c.b16 %v174, %v173
      %v186 = vpack.c.b16 %v176, %v175
      %v187 = vpack.c.b16 %v178, %v177
      %v188 = vpack.c.b16 %v180, %v179
      %197 = vmatprep.subr.bf16.mxu0 0
      %198 = vmatpush1.bf16.msra.mxu0 %v188
      %199 = vmatprep.subr.bf16.mxu0 0
      %200 = vmatpush1.bf16.msra.mxu0 %v187
      %201 = vmatprep.subr.bf16.mxu0 0
      %202 = vmatpush1.bf16.msra.mxu0 %v186
      %203 = vmatprep.subr.bf16.mxu0 0
      %204 = vmatpush1.bf16.msra.mxu0 %v185
      %205 = vmatprep.subr.bf16.mxu0 0
      %206 = vmatpush1.bf16.msra.mxu0 %v184
      %207 = vmatprep.subr.bf16.mxu0 0
      %208 = vmatpush1.bf16.msra.mxu0 %v183
      %209 = vmatprep.subr.bf16.mxu0 0
      %210 = vmatpush1.bf16.msra.mxu0 %v182
      %211 = vmatprep.subr.bf16.mxu0 0
      %212 = vmatpush1.bf16.msra.mxu0 %v181
      %213 = vmatprep.subr.bf16.mxu0 0
      %214 = vmatpush2.bf16.msra.mxu0 0
      %215 = vmatprep.subr.bf16.mxu0 0
      %216 = vmatpush2.bf16.msra.mxu0 0
      %217 = vmatprep.subr.bf16.mxu0 0
      %218 = vmatpush2.bf16.msra.mxu0 0
      %219 = vmatprep.subr.bf16.mxu0 0
      %220 = vmatpush2.bf16.msra.mxu0 0
      %221 = vmatprep.subr.bf16.mxu0 0
      %222 = vmatpush2.bf16.msra.mxu0 0
      %223 = vmatprep.subr.bf16.mxu0 0
      %224 = vmatpush2.bf16.msra.mxu0 0
      %225 = vmatprep.subr.bf16.mxu0 0
      %226 = vmatpush2.bf16.msra.mxu0 0
      %227 = vmatprep.subr.bf16.mxu0 0
      %228 = vmatpush2.bf16.msra.mxu0 0
      %229 = vmatprep.mubr.bf16.mxu0 0
      %230 = vmatmul.mubr.bf16.gmra.mxu0 %v131
      %v231 = vpop.f32.mrf.mxu0
      %v232 = vadd.f32 0.0, %v231
      %v233 = vpop.f32.mrf.mxu0
      %v234 = vpop.f32.mrf.mxu0
      %v235 = vpop.f32.mrf.mxu0
      %236 = vdwg.mxu0
      %v237 = vadd.f32 %v132, %v232
      %238 = vst [vmem:[#allocation10] sm:$0xff] %v237
    $region41: #{tpu_custom_call.1} parent=1 // pred_fallthru
      _
    // Predicated region
    $region42: #{tpu_custom_call.1} parent=1 // pred_check
      %p239 = pneg %p110
    $region43: #{tpu_custom_call.1} parent=1 // pred_check_branch
      %241 = sbr.rel (%p239) target = $region45
    $region44: #{tpu_custom_call.1} parent=1 // pred_region
      %v242 = vld [vmem:[#allocation10] sm:$0xff]
      %v243 = vld [vmem:[#allocation8] sm:$0xff]
      %v244 = vld [vmem:[#allocation8 + $0x8] sm:$0xff]
      %v245 = vld [vmem:[#allocation8 + $0x10] sm:$0xff]
      %v246 = vld [vmem:[#allocation8 + $0x18] sm:$0xff]
      %v247 = vld [vmem:[#allocation8 + $0x20] sm:$0xff]
      %v248 = vld [vmem:[#allocation8 + $0x28] sm:$0xff]
      %v249 = vld [vmem:[#allocation8 + $0x30] sm:$0xff]
      %v250 = vld [vmem:[#allocation8 + $0x38] sm:$0xff]
      %v251 = vld [vmem:[#allocation8 + $0x40] sm:$0xff]
      %v252 = vld [vmem:[#allocation8 + $0x48] sm:$0xff]
      %v253 = vld [vmem:[#allocation8 + $0x50] sm:$0xff]
      %v254 = vld [vmem:[#allocation8 + $0x58] sm:$0xff]
      %v255 = vld [vmem:[#allocation8 + $0x60] sm:$0xff]
      %v256 = vld [vmem:[#allocation8 + $0x68] sm:$0xff]
      %v257 = vld [vmem:[#allocation8 + $0x70] sm:$0xff]
      %v258 = vld [vmem:[#allocation8 + $0x78] sm:$0xff]
      %v259 = vld [vmem:[%s5] sm:$0xff]
      %v260 = vld [vmem:[%s6] sm:$0x1]
      %262 = vset.pattern.permute.xlu0 0
      %263 = vperm.xlu0 %262, %v259
      %v264 = vpop.permute.xlu0 %263
      %v267 = vlaneseq
      %v268 = vshrl.u32 %v267, 7
      %v269 = vsub.s32 0, %v268
      %v270 = vrot.slane %v260, %v269
      %v272 = vmul.f32 %v264, %v270
      %273 = vmatprep.subr.mxu0 0.0
      %274 = vmatpush1.msra.mxu0 %v258
      %275 = vmatprep.subr.mxu0 0.0
      %276 = vmatpush1.msra.mxu0 %v257
      %277 = vmatprep.subr.mxu0 0.0
      %278 = vmatpush1.msra.mxu0 %v256
      %279 = vmatprep.subr.mxu0 0.0
      %280 = vmatpush1.msra.mxu0 %v255
      %281 = vmatprep.subr.mxu0 0.0
      %282 = vmatpush1.msra.mxu0 %v254
      %283 = vmatprep.subr.mxu0 0.0
      %284 = vmatpush1.msra.mxu0 %v253
      %285 = vmatprep.subr.mxu0 0.0
      %286 = vmatpush1.msra.mxu0 %v252
      %287 = vmatprep.subr.mxu0 0.0
      %288 = vmatpush1.msra.mxu0 %v251
      %289 = vmatprep.subr.mxu0 0.0
      %290 = vmatpush1.msra.mxu0 %v250
      %291 = vmatprep.subr.mxu0 0.0
      %292 = vmatpush1.msra.mxu0 %v249
      %293 = vmatprep.subr.mxu0 0.0
      %294 = vmatpush1.msra.mxu0 %v248
      %295 = vmatprep.subr.mxu0 0.0
      %296 = vmatpush1.msra.mxu0 %v247
      %297 = vmatprep.subr.mxu0 0.0
      %298 = vmatpush1.msra.mxu0 %v246
      %299 = vmatprep.subr.mxu0 0.0
      %300 = vmatpush1.msra.mxu0 %v245
      %301 = vmatprep.subr.mxu0 0.0
      %302 = vmatpush1.msra.mxu0 %v244
      %303 = vmatprep.subr.mxu0 0.0
      %304 = vmatpush1.msra.mxu0 %v243
      %305 = vmatprep.subr.mxu0 0.0
      %306 = vmatpush2.msra.mxu0 0.0
      %307 = vmatprep.subr.mxu0 0.0
      %308 = vmatpush2.msra.mxu0 0.0
      %309 = vmatprep.subr.mxu0 0.0
      %310 = vmatpush2.msra.mxu0 0.0
      %311 = vmatprep.subr.mxu0 0.0
      %312 = vmatpush2.msra.mxu0 0.0
      %313 = vmatprep.subr.mxu0 0.0
      %314 = vmatpush2.msra.mxu0 0.0
      %315 = vmatprep.subr.mxu0 0.0
      %316 = vmatpush2.msra.mxu0 0.0
      %317 = vmatprep.subr.mxu0 0.0
      %318 = vmatpush2.msra.mxu0 0.0
      %319 = vmatprep.subr.mxu0 0.0
      %320 = vmatpush2.msra.mxu0 0.0
      %321 = vmatprep.subr.mxu0 0.0
      %322 = vmatpush2.msra.mxu0 0.0
      %323 = vmatprep.subr.mxu0 0.0
      %324 = vmatpush2.msra.mxu0 0.0
      %325 = vmatprep.subr.mxu0 0.0
      %326 = vmatpush2.msra.mxu0 0.0
      %327 = vmatprep.subr.mxu0 0.0
      %328 = vmatpush2.msra.mxu0 0.0
      %329 = vmatprep.subr.mxu0 0.0
      %330 = vmatpush2.msra.mxu0 0.0
      %331 = vmatprep.subr.mxu0 0.0
      %332 = vmatpush2.msra.mxu0 0.0
      %333 = vmatprep.subr.mxu0 0.0
      %334 = vmatpush2.msra.mxu0 0.0
      %335 = vmatprep.subr.mxu0 0.0
      %336 = vmatpush2.msra.mxu0 0.0
      %337 = vmatprep.mubr.f32.mxu0 0.0
      %338 = vmatmul.mubr.f32.gmra.mxu0 %v242
      %v339 = vpop.f32.mrf.mxu0
      %v340 = vadd.f32 %v272, %v339
      %v341 = vpop.f32.mrf.mxu0
      %342 = vdwg.mxu0
      %v343 = vld [vmem:[%s7] sm:$0x1]
      %v345 = vlaneseq
      %v346 = vshrl.u32 %v345, 7
      %v347 = vsub.s32 0, %v346
      %v348 = vrot.slane %v343, %v347
      %v350 = vadd.f32 %v340, %v348
      %351 = vst [vmem:[#allocation10] sm:$0xff] %v350
    $region45: #{tpu_custom_call.1} parent=1 // pred_fallthru
      _
    // Predicated region
    $region46: #{tpu_custom_call.1} parent=1 // pred_check
      _
    $region47: #{tpu_custom_call.1} parent=1 // pred_check_branch
      %353 = sbr.rel (0) target = $region49
    $region48: #{tpu_custom_call.1} parent=1 // pred_region
      %s355 = ssub.s32 128, 128
      %356 = vsyncadd [#allocation7], %s355
      %s358 = sshll.u32 [#allocation10], 4
      %s359 = int_to_ptr.vmem [resolvable:$true] %s358
      %361 = dma.vmem_to_hbm [thread:$0]  %s359, 128, %s8, [#allocation7]
    $region49: #{tpu_custom_call.1} parent=1 // pred_fallthru
      _
    // Predicated region
    $region50: #{tpu_custom_call.1} parent=1 // pred_check
      _
    $region51: #{tpu_custom_call.1} parent=1 // pred_check_branch
      %363 = sbr.rel (0) target = $region53
    $region52: #{tpu_custom_call.1} parent=1 // pred_region
      %364 = dma.done [#allocation7], 128
    $region53: #{tpu_custom_call.1} parent=1 // pred_fallthru
      _
    %365 = vsyncpa [#allocation6], 1
    %366 = vsyncpa [#allocation9], 1
    %367 = vsyncpa [#allocation7], 1

</llo_original>
